<compile_context>
chip_gen: v6e
topology: v6e:2x2x1
jax: 0.10.0
libtpu: 0.0.40
codegen_flags: <defaults>
</compile_context>

<pallas_src>
import jax
import jax.numpy as jnp
from jax.experimental import pallas as pl
from jax.experimental.pallas import tpu as pltpu

_LANES = 128
_SUBLANES = 8
_MAX_BLOCK_ROWS = 512  # 512x128 f32 = 256 KiB per buffer -> safe on v5e/v6e/v7x


def linreg_kernel(wb_ref, x_ref, o_ref):
    # wb_ref is a (2,) SMEM scalar buffer: [weight, bias].
    # The VPU broadcasts the scalars across the full lane-dense tile.
    w = wb_ref[0]
    b = wb_ref[1]
    o_ref[...] = w * x_ref[...] + b


def linear_regg(x, weights, bias):
    """Elementwise affine y = weights * x + bias.

    x: any-shaped f32 array (module uses (N, 1)); weights, bias: (1,) f32.
    Returns an array with x's shape and dtype.
    """
    orig_shape = x.shape
    dtype = x.dtype
    flat = x.reshape(-1)
    n = flat.shape[0]

    # --- Lane-dense repack: (N, 1) -> (rows, 128) slab, padded to 8x128 tiles.
    rows_min = pl.cdiv(max(n, 1), _LANES)
    rows_min = pl.cdiv(rows_min, _SUBLANES) * _SUBLANES

    if rows_min <= _MAX_BLOCK_ROWS:
        # Tiny case (e.g. N=40): one grid point, one (<=512, 128) block.
        block_rows = rows_min
        rows = rows_min
    else:
        # Large case: tile the flattened element axis with 512x128 blocks and
        # let the grid axis be parallel (megacore / 2-TC sharding on v7x).
        block_rows = _MAX_BLOCK_ROWS
        rows = pl.cdiv(rows_min, _MAX_BLOCK_ROWS) * _MAX_BLOCK_ROWS

    padded = rows * _LANES
    if padded != n:
        flat = jnp.pad(flat, (0, padded - n))
    slab = flat.reshape(rows, _LANES)

    # Pack scalar params into a single (2,) SMEM argument.
    wb = jnp.concatenate(
        [jnp.reshape(weights, (-1,)), jnp.reshape(bias, (-1,))]
    ).astype(dtype)

    grid = (rows // block_rows,)

    out_slab = pl.pallas_call(
        linreg_kernel,
        out_shape=jax.ShapeDtypeStruct((rows, _LANES), dtype),
        grid=grid,
        in_specs=[
            pl.BlockSpec(memory_space=pltpu.SMEM),              # (2,) scalars
            pl.BlockSpec((block_rows, _LANES), lambda i: (i, 0)),
        ],
        out_specs=pl.BlockSpec((block_rows, _LANES), lambda i: (i, 0)),
        compiler_params=pltpu.CompilerParams(
            dimension_semantics=("parallel",),
        ),
    )(wb, slab)

    # Undo padding / repack back to the caller's layout.
    return out_slab.reshape(-1)[:n].reshape(orig_shape)


if __name__ == "__main__":
    # Input exactly as the PyTorch script: arange(0, 8, 0.2).unsqueeze(1) -> (40, 1)
    start, end, step = 0.0, 8.0, 0.2
    x = jnp.arange(start, end, step, dtype=jnp.float32)[:, None]

    # Deterministic synthetic parameters (torch.randn(1) analogue).
    key = jax.random.PRNGKey(0)
    kw, kb = jax.random.split(key)
    weights = jax.random.normal(kw, (1,), dtype=jnp.float32)
    bias = jax.random.normal(kb, (1,), dtype=jnp.float32)

    out = linear_regg(x, weights, bias)
    out = jax.block_until_ready(out)

    ref = weights * x + bias
    assert out.shape == x.shape
    assert jnp.allclose(out, ref, atol=1e-6), "mismatch vs reference (small)"

    # Also exercise the tiled (grid > 1, parallel) path with a larger input.
    x_big = jnp.linspace(-3.0, 3.0, 70_000, dtype=jnp.float32)[:, None]
    out_big = jax.block_until_ready(linear_regg(x_big, weights, bias))
    ref_big = weights * x_big + bias
    assert out_big.shape == x_big.shape
    assert jnp.allclose(out_big, ref_big, atol=1e-6), "mismatch vs reference (big)"

    print("KERNEL_OK")
</pallas_src>

<mosaic_0001>
module attributes {stable_mosaic.version = 11 : i64} {
  func.func @linreg_kernel(%arg0: i32, %arg1: memref<2xf32, #tpu.memory_space<smem>>, %arg2: memref<8x128xf32, #tpu.memory_space<vmem>>, %arg3: memref<8x128xf32, #tpu.memory_space<vmem>>) attributes {dimension_semantics = [#tpu.dimension_semantics<parallel>], iteration_bounds = array<i64: 1>, scalar_prefetch = 0 : i64, scratch_operands = 0 : i64, tpu.core_type = #tpu.core_type<tc>, window_params = [{transform_indices = @transform_0, window_bounds = array<i64: 2>}, {transform_indices = @transform_1, window_bounds = array<i64: 8, 128>}, {transform_indices = @transform_2, window_bounds = array<i64: 8, 128>}]} {
    %c0 = arith.constant 0 : index
    %0 = memref.load %arg1[%c0] : memref<2xf32, #tpu.memory_space<smem>>
    %c1 = arith.constant 1 : index
    %1 = memref.load %arg1[%c1] : memref<2xf32, #tpu.memory_space<smem>>
    %c0_0 = arith.constant 0 : index
    %c0_1 = arith.constant 0 : index
    %2 = vector.load %arg2[%c0_0, %c0_1] : memref<8x128xf32, #tpu.memory_space<vmem>>, vector<8x128xf32>
    %3 = vector.broadcast %0 : f32 to vector<8x128xf32>
    %4 = arith.mulf %3, %2 : vector<8x128xf32>
    %5 = vector.broadcast %1 : f32 to vector<8x128xf32>
    %6 = arith.addf %4, %5 : vector<8x128xf32>
    %c0_2 = arith.constant 0 : index
    %c0_3 = arith.constant 0 : index
    %7 = vector.load %arg3[%c0_2, %c0_3] : memref<8x128xf32, #tpu.memory_space<vmem>>, vector<8x128xf32>
    tpu.vector_store %arg3[%c0_2, %c0_3], %6 {strides = array<i32>} : memref<8x128xf32, #tpu.memory_space<vmem>>, vector<8x128xf32>,
    return
  }
  func.func @transform_0(%arg0: i32) -> i32 {
    %c0_i32 = arith.constant 0 : i32
    %c0_i32_0 = arith.constant 0 : i32
    return %c0_i32 : i32
  }
  func.func @transform_1(%arg0: i32) -> (i32, i32) {
    %c0_i32 = arith.constant 0 : i32
    %c0_i32_0 = arith.constant 0 : i32
    return %arg0, %c0_i32 : i32, i32
  }
  func.func @transform_2(%arg0: i32) -> (i32, i32) {
    %c0_i32 = arith.constant 0 : i32
    %c0_i32_0 = arith.constant 0 : i32
    return %arg0, %c0_i32 : i32, i32
  }
}

</mosaic_0001>

<llo_original>
// kernel: tpu_custom_call.1
$region0: #{tpu_custom_call.1}
  #allocation0 [shape = 'u32[]', space=smem, size = 0x4, offset = 0x4, fixed_abs, tag = 'smem constant byte address 0x4 - core index']
  #allocation1 [shape = 'u32[144,128]{1,0:T(1,128)}', space=vmem, size = 0x12000, scoped, tag = 'internal scratch']
  %s0 = inlined_call_operand.hbm [shape: f32[2], index: 0, kind: input, shape index: {}]
  %s1 = inlined_call_operand.hbm [shape: f32[8,128], index: 1, kind: input, shape index: {}]
  %s2 = inlined_call_operand.hbm [shape: f32[8,128], index: 2, kind: output, shape index: {}]
  %s3 = sld [smem:[#allocation0]]
  $region26: #{tpu_custom_call.1} parent=0
    _
  %s5 = ssub.s32 1, %s3
  %s6 = scalar_select 0, %s5, %s3
  $region1: #{tpu_custom_call.1} parent=0
    #allocation2 [shape = 'u8[512]{0}', space=smem, size = 0x200, scoped, tag = 'input window, operand 0, single buffered']
    #allocation3 [shape = 's32[1]{0}', space=sflag, size = 0x4, scoped, tag = 'scoped memory for tpu_custom_call.1']
    #allocation4 [shape = 's32[1]{0}', space=sflag, size = 0x4, scoped, tag = 'scoped memory for tpu_custom_call.1']
    #allocation5 [shape = 's32[1]{0}', space=sflag, size = 0x4, scoped, tag = 'scoped memory for tpu_custom_call.1']
    #allocation6 [shape = 'u8[4096]{0}', space=vmem, size = 0x1000, scoped, tag = 'input window, operand 1, single buffered']
    #allocation7 [shape = 'u8[4096]{0}', space=vmem, size = 0x1000, scoped, tag = 'output window, operand 0, single buffered']
    %7 = vsyncpa [#allocation5], 0
    %8 = vsyncpa [#allocation3], 0
    %9 = vsyncpa [#allocation4], 0
    // Predicated region
    $region2: #{tpu_custom_call.1} parent=1 // pred_check
      _
    $region3: #{tpu_custom_call.1} parent=1 // pred_check_branch
      %11 = sbr.rel (0) target = $region5
    $region4: #{tpu_custom_call.1} parent=1 // pred_region
      %s13 = ssub.s32 16, 16
      %14 = vsyncadd [#allocation5], %s13
      %17 = dma.hbm_to_smem %s0, 16, [#allocation2], [#allocation5]
    $region5: #{tpu_custom_call.1} parent=1 // pred_fallthru
      _
    // Predicated region
    $region6: #{tpu_custom_call.1} parent=1 // pred_check
      _
    $region7: #{tpu_custom_call.1} parent=1 // pred_check_branch
      %19 = sbr.rel (0) target = $region9
    $region8: #{tpu_custom_call.1} parent=1 // pred_region
      %s21 = ssub.s32 128, 128
      %22 = vsyncadd [#allocation3], %s21
      %s24 = sshll.u32 [#allocation6], 4
      %s25 = int_to_ptr.vmem [resolvable:$true] %s24
      %27 = dma.hbm_to_vmem [thread:$0]  %s1, 128, %s25, [#allocation3]
    $region9: #{tpu_custom_call.1} parent=1 // pred_fallthru
      _
    // Predicated region
    $region10: #{tpu_custom_call.1} parent=1 // pred_check
      _
    $region11: #{tpu_custom_call.1} parent=1 // pred_check_branch
      %29 = sbr.rel (0) target = $region13
    $region12: #{tpu_custom_call.1} parent=1 // pred_region
      %30 = dma.done [#allocation5], 16
    $region13: #{tpu_custom_call.1} parent=1 // pred_fallthru
      _
    // Predicated region
    $region14: #{tpu_custom_call.1} parent=1 // pred_check
      _
    $region15: #{tpu_custom_call.1} parent=1 // pred_check_branch
      %32 = sbr.rel (0) target = $region17
    $region16: #{tpu_custom_call.1} parent=1 // pred_region
      %33 = dma.done [#allocation3], 128
    $region17: #{tpu_custom_call.1} parent=1 // pred_fallthru
      _
    %34 = sfence
    %s35 = sld [smem:[#allocation2]]
    %s36 = sld [smem:[#allocation2 + $0x1]]
    %v37 = vld [vmem:[#allocation6] sm:$0xff]
    %v38 = vstv %s35
    %v39 = vmul.f32 %v38, %v37
    %v40 = vstv %s36
    %v41 = vadd.f32 %v39, %v40
    %42 = vst [vmem:[#allocation7] sm:$0xff] %v41
    // Predicated region
    $region18: #{tpu_custom_call.1} parent=1 // pred_check
      _
    $region19: #{tpu_custom_call.1} parent=1 // pred_check_branch
      %44 = sbr.rel (0) target = $region21
    $region20: #{tpu_custom_call.1} parent=1 // pred_region
      %s46 = ssub.s32 128, 128
      %47 = vsyncadd [#allocation4], %s46
      %s49 = sshll.u32 [#allocation7], 4
      %s50 = int_to_ptr.vmem [resolvable:$true] %s49
      %52 = dma.vmem_to_hbm [thread:$0]  %s50, 128, %s2, [#allocation4]
    $region21: #{tpu_custom_call.1} parent=1 // pred_fallthru
      _
    // Predicated region
    $region22: #{tpu_custom_call.1} parent=1 // pred_check
      _
    $region23: #{tpu_custom_call.1} parent=1 // pred_check_branch
      %54 = sbr.rel (0) target = $region25
    $region24: #{tpu_custom_call.1} parent=1 // pred_region
      %55 = dma.done [#allocation4], 128
    $region25: #{tpu_custom_call.1} parent=1 // pred_fallthru
      _
    %56 = vsyncpa [#allocation3], 1
    %57 = vsyncpa [#allocation4], 1
    %58 = vsyncpa [#allocation5], 1

</llo_original>
